<compile_context>
chip_gen: v7x
topology: tpu7x:2x2x1
jax: 0.10.0
libtpu: 0.0.40
codegen_flags: <defaults>
</compile_context>

<pallas_src>
import functools

import jax
import jax.numpy as jnp
from jax import lax
from jax.experimental import pallas as pl
from jax.experimental.pallas import tpu as pltpu


def _round_up(x, m):
    return (x + m - 1) // m * m


def prepare_mf_tables(W, H):
    """Pack the two embedding tables ONCE, outside the per-step hot path.

    Returns the block-diagonal [[W^T, 0], [0, H^T]] matrix of shape (2K, NU+NI) in f32,
    so the in-kernel gather of BOTH embeddings is a single MXU matmul against one
    stacked one-hot (and no per-call transpose of the tables is needed).
    """
    nu, k = W.shape
    ni, k2 = H.shape
    assert k == k2, "W and H must share the embedding dimension"
    wT = jnp.asarray(W, jnp.float32).T                     # (K, NU)
    hT = jnp.asarray(H, jnp.float32).T                     # (K, NI)
    top = jnp.concatenate([wT, jnp.zeros((k, ni), jnp.float32)], axis=1)
    bot = jnp.concatenate([jnp.zeros((k, nu), jnp.float32), hT], axis=1)
    return jnp.concatenate([top, bot], axis=0)             # (2K, NU+NI)


def mf_kernel(uid_ref, vid_ref, tbl_ref, o_ref, *, embedding_k):
    """One batch tile.

    uid_ref : (1, TB)       int32  user indices            (batch on the lane axis)
    vid_ref : (1, TB)       int32  item indices, pre-offset by num_users
    tbl_ref : (2K, NU+NI)   f32    block-diagonal [[W^T,0],[0,H^T]], VMEM-resident
    o_ref   : (1, TB)       f32    sigmoid(<U_emb, V_emb>)
    """
    uid = uid_ref[...]                                     # (1, TB)
    vid = vid_ref[...]                                     # (1, TB), already shifted
    tbl = tbl_ref[...]                                     # (2K, NV)

    nv = tbl.shape[1]
    tb = uid.shape[1]

    # One stacked one-hot with two 1s per column: the user row and the (shifted) item row.
    # NOTE: out-of-range indices produce a missing one-hot hit -> zero embedding ->
    # sigmoid(0)=0.5 instead of an error (torch's nn.Embedding would raise).
    rows = lax.broadcasted_iota(jnp.int32, (nv, tb), 0)
    onehot = jnp.logical_or(rows == uid, rows == vid).astype(jnp.float32)   # (NV, TB)

    # ONE fused MXU gather: (2K, NV) @ (NV, TB) -> (2K, TB); rows [0:K) = U_emb,
    # rows [K:2K) = V_emb (the zero blocks of the packed table mask the other hit).
    emb = jnp.dot(tbl, onehot, preferred_element_type=jnp.float32)          # (2K, TB)
    u_emb = emb[:embedding_k, :]
    v_emb = emb[embedding_k:, :]

    # Elementwise multiply + tiny sublane reduction over K (VPU + XLU; MXU stays free).
    score = jnp.sum(u_emb * v_emb, axis=0, keepdims=True)                   # (1, TB)
    o_ref[...] = jax.nn.sigmoid(score).astype(o_ref.dtype)                  # f32 EUP sigmoid


def mf_forward(x_idx, packed_table, num_users, *, tb=1024):
    """MF.forward(x): x_idx (B, 2) int indices -> (B,) f32 predictions.

    packed_table: output of `prepare_mf_tables(W, H)`, shape (2K, NU+NI) f32.
    """
    B = x_idx.shape[0]
    two_k, nv = packed_table.shape
    K = two_k // 2

    uid = x_idx[:, 0].astype(jnp.int32)
    # Shift item indices into the stacked row space once, in the wrapper (saves a VPU add).
    vid = x_idx[:, 1].astype(jnp.int32) + jnp.int32(num_users)

    # Lane-dense batch tiles (multiple of 128).  Big tiles amortize the ~0.35 us/step
    # overhead, but keep >= 2 tiles whenever the batch allows so v7x's second TensorCore
    # gets work under dimension_semantics=("parallel",).
    tb = _round_up(max(128, min(int(tb), 2048)), 128)
    b128 = _round_up(B, 128)
    if b128 >= 256:
        tb = min(tb, max(128, (b128 // 2) // 128 * 128))
    else:
        tb = 128
    Bp = _round_up(B, tb)
    n_tiles = Bp // tb

    if Bp != B:
        pad = Bp - B
        uid = jnp.pad(uid, (0, pad))                          # user 0: valid, sliced off later
        vid = jnp.pad(vid, (0, pad), constant_values=num_users)  # item 0: valid, sliced off later
    uid2 = uid.reshape(1, Bp)                                 # batch on the lane axis
    vid2 = vid.reshape(1, Bp)

    # Explicit VMEM budget: packed table (single copy — un-pipelined VMEM operand) +
    # double-buffered idx/out tiles + one-hot / embedding intermediates, 2x headroom,
    # clamped to [32 MiB, 64 MiB] so it is valid on v5e/v6e/v7x scoped limits.
    table_bytes = two_k * nv * 4
    io_bytes = 2 * (3 * tb * 4)
    interm_bytes = (_round_up(nv, 8) + 2 * _round_up(two_k, 8)) * tb * 4
    vmem_limit = int(min(max(2 * (table_bytes + io_bytes + interm_bytes), 32 * 1024 * 1024),
                         64 * 1024 * 1024))

    cost = pl.CostEstimate(
        flops=2 * two_k * nv * Bp + 2 * K * Bp,
        transcendentals=Bp,
        bytes_accessed=4 * (2 * Bp + two_k * nv + Bp),
    )

    kernel = functools.partial(mf_kernel, embedding_k=K)

    out = pl.pallas_call(
        kernel,
        out_shape=jax.ShapeDtypeStruct((1, Bp), jnp.float32),
        grid_spec=pltpu.PrefetchScalarGridSpec(
            num_scalar_prefetch=0,
            grid=(n_tiles,),
            in_specs=[
                pl.BlockSpec((1, tb), lambda i: (0, i)),       # user indices (per tile)
                pl.BlockSpec((1, tb), lambda i: (0, i)),       # item indices (per tile)
                # Packed table: whole operand placed in VMEM once (no per-step DMA,
                # no double-buffering) — the "resident, single-buffered" table.
                pl.BlockSpec(memory_space=pltpu.MemorySpace.VMEM),
            ],
            out_specs=pl.BlockSpec((1, tb), lambda i: (0, i)),  # lane-dense output slab
        ),
        compiler_params=pltpu.CompilerParams(
            dimension_semantics=("parallel",),                  # shard batch tiles across TCs
            vmem_limit_bytes=vmem_limit,
        ),
        cost_estimate=cost,
    )(uid2, vid2, packed_table)

    return out.reshape(Bp)[:B]


if __name__ == "__main__":
    key = jax.random.PRNGKey(0)
    k_u, k_i, k_w, k_h = jax.random.split(key, 4)

    num_users = 32
    num_items = 48
    embedding_k = 4          # module default
    batch = 256

    # nn.Embedding default init ~ N(0, 1)
    W = jax.random.normal(k_w, (num_users, embedding_k), jnp.float32)
    H = jax.random.normal(k_h, (num_items, embedding_k), jnp.float32)

    user_idx = jax.random.randint(k_u, (batch,), 0, num_users, jnp.int32)
    item_idx = jax.random.randint(k_i, (batch,), 0, num_items, jnp.int32)
    x = jnp.stack([user_idx, item_idx], axis=1)      # (B, 2), like the torch module's x

    # Table packing is done once, outside the per-forward hot path.
    packed = prepare_mf_tables(W, H)

    # B=256 -> tile clamp yields 2 tiles of 128 rows (multi-step grid, both v7x cores busy).
    y = mf_forward(x, packed, num_users)
    jax.block_until_ready(y)

    # Pure-JAX reference: sigmoid(sum(W[uid] * H[vid], axis=1))
    ref = jax.nn.sigmoid(jnp.sum(W[user_idx] * H[item_idx], axis=1))
    assert y.shape == (batch,)
    assert jnp.allclose(y, ref, atol=1e-5, rtol=1e-5)

    print("KERNEL_OK")
</pallas_src>

<mosaic_0001>
module attributes {stable_mosaic.version = 11 : i64} {
  func.func @mf_kernel(%arg0: i32, %arg1: memref<1x128xi32, #tpu.memory_space<vmem>>, %arg2: memref<1x128xi32, #tpu.memory_space<vmem>>, %arg3: memref<8x80xf32, #tpu.memory_space<vmem>>, %arg4: memref<1x128xf32, #tpu.memory_space<vmem>>) attributes {dimension_semantics = [#tpu.dimension_semantics<parallel>], iteration_bounds = array<i64: 2>, scalar_prefetch = 0 : i64, scratch_operands = 0 : i64, tpu.core_type = #tpu.core_type<tc>, window_params = [{transform_indices = @transform_0, window_bounds = array<i64: 1, 128>}, {transform_indices = @transform_1, window_bounds = array<i64: 1, 128>}, {pipeline_mode = #tpu.pipeline_mode<synchronous>, transform_indices = @transform_2, window_bounds = array<i64: 8, 80>}, {transform_indices = @transform_3, window_bounds = array<i64: 1, 128>}]} {
    %c0 = arith.constant 0 : index
    %c0_0 = arith.constant 0 : index
    %0 = vector.load %arg1[%c0, %c0_0] : memref<1x128xi32, #tpu.memory_space<vmem>>, vector<1x128xi32>
    %c0_1 = arith.constant 0 : index
    %c0_2 = arith.constant 0 : index
    %1 = vector.load %arg2[%c0_1, %c0_2] : memref<1x128xi32, #tpu.memory_space<vmem>>, vector<1x128xi32>
    %c0_3 = arith.constant 0 : index
    %c0_4 = arith.constant 0 : index
    %2 = vector.load %arg3[%c0_3, %c0_4] : memref<8x80xf32, #tpu.memory_space<vmem>>, vector<8x80xf32>
    %3 = tpu.iota {dimensions = array<i32: 0>} : vector<80x128xi32>
    %4 = vector.broadcast %0 : vector<1x128xi32> to vector<80x128xi32>
    %5 = arith.cmpi eq, %3, %4 : vector<80x128xi32>
    %6 = vector.broadcast %1 : vector<1x128xi32> to vector<80x128xi32>
    %7 = arith.cmpi eq, %3, %6 : vector<80x128xi32>
    %8 = arith.ori %5, %7 : vector<80x128xi1>
    %9 = arith.extui %8 : vector<80x128xi1> to vector<80x128xi32>
    %10 = arith.sitofp %9 : vector<80x128xi32> to vector<80x128xf32>
    %cst = arith.constant dense<0.000000e+00> : vector<8x128xf32>
    %11 = tpu.matmul %2, %10, %cst {dimension_numbers = #tpu.dot_dimension_numbers<[1], [0], [0], [1], [0, 0, 1, 1], [], []>} : vector<8x80xf32>, vector<80x128xf32>, vector<8x128xf32> -> vector<8x128xf32>
    %12 = vector.extract_strided_slice %11 {offsets = [0, 0], sizes = [4, 128], strides = [1, 1]} : vector<8x128xf32> to vector<4x128xf32>
    %13 = vector.extract_strided_slice %11 {offsets = [4, 0], sizes = [4, 128], strides = [1, 1]} : vector<8x128xf32> to vector<4x128xf32>
    %14 = arith.mulf %12, %13 : vector<4x128xf32>
    %cst_5 = arith.constant dense<0.000000e+00> : vector<128xf32>
    %15 = vector.multi_reduction <add>, %14, %cst_5 [0] : vector<4x128xf32> to vector<128xf32>
    %16 = vector.shape_cast %15 : vector<128xf32> to vector<1x128xf32>
    %17 = arith.negf %16 : vector<1x128xf32>
    %18 = math.exp %17 : vector<1x128xf32>
    %cst_6 = arith.constant 1.000000e+00 : f32
    %19 = vector.broadcast %cst_6 : f32 to vector<1x128xf32>
    %20 = arith.addf %19, %18 : vector<1x128xf32>
    %21 = arith.divf %19, %20 : vector<1x128xf32>
    %c0_7 = arith.constant 0 : index
    %c0_8 = arith.constant 0 : index
    %22 = vector.load %arg4[%c0_7, %c0_8] : memref<1x128xf32, #tpu.memory_space<vmem>>, vector<1x128xf32>
    tpu.vector_store %arg4[%c0_7, %c0_8], %21 {strides = array<i32>} : memref<1x128xf32, #tpu.memory_space<vmem>>, vector<1x128xf32>,
    return
  }
  func.func @transform_0(%arg0: i32) -> (i32, i32) {
    %c0_i32 = arith.constant 0 : i32
    %c0_i32_0 = arith.constant 0 : i32
    return %c0_i32, %arg0 : i32, i32
  }
  func.func @transform_1(%arg0: i32) -> (i32, i32) {
    %c0_i32 = arith.constant 0 : i32
    %c0_i32_0 = arith.constant 0 : i32
    return %c0_i32, %arg0 : i32, i32
  }
  func.func @transform_2(%arg0: i32) -> (i32, i32) {
    %c0_i32 = arith.constant 0 : i32
    %c0_i32_0 = arith.constant 0 : i32
    %c0_i32_1 = arith.constant 0 : i32
    return %c0_i32, %c0_i32_0 : i32, i32
  }
  func.func @transform_3(%arg0: i32) -> (i32, i32) {
    %c0_i32 = arith.constant 0 : i32
    %c0_i32_0 = arith.constant 0 : i32
    return %c0_i32, %arg0 : i32, i32
  }
}

</mosaic_0001>

<llo_original>
// kernel: tpu_custom_call.1
$region0: #{tpu_custom_call.1}
  #allocation0 [shape = 'u32[]', space=smem, size = 0x4, offset = 0x4, fixed_abs, tag = 'smem constant byte address 0x4 - core index']
  #allocation1 [shape = 'u32[144,128]{1,0:T(1,128)}', space=vmem, size = 0x12000, scoped, tag = 'internal scratch']
  %s0 = inlined_call_operand.hbm [shape: s32[1,256], index: 0, kind: input, shape index: {}]
  %s1 = inlined_call_operand.vmem [shape: s32[1,256], index: 1, kind: input, shape index: {}]
  %s2 = inlined_call_operand.hbm [shape: f32[8,80], index: 2, kind: input, shape index: {}]
  %s3 = inlined_call_operand.hbm [shape: f32[1,256], index: 3, kind: output, shape index: {}]
  %s4 = sld [smem:[#allocation0]]
  $region53: #{tpu_custom_call.1} parent=0
    _
  %s6 = ssub.s32 1, %s4
  %s7 = scalar_select 0, %s6, %s4
  $region1: #{tpu_custom_call.1} parent=0
    #allocation2 [shape = 'u8[1024]{0}', space=vmem, size = 0x400, scoped, tag = 'input window, operand 0']
    #allocation3 [shape = 's32[2]{0}', space=sflag, size = 0x8, scoped, tag = 'scoped memory for tpu_custom_call.1']
    #allocation4 [shape = 's32[2]{0}', space=sflag, size = 0x8, scoped, tag = 'scoped memory for tpu_custom_call.1']
    #allocation5 [shape = 'u8[4096]{0}', space=vmem, size = 0x1000, scoped, tag = 'input window, operand 2, single buffered']
    #allocation6 [shape = 's32[1]{0}', space=sflag, size = 0x4, scoped, tag = 'scoped memory for tpu_custom_call.1']
    #allocation7 [shape = 'u8[1024]{0}', space=vmem, size = 0x400, scoped, tag = 'output window, operand 0']
    %8 = vsyncpa [#allocation3], 0
    %s9 = scalar_lea.sflag [#allocation3], 1
    %10 = vsyncpa %s9, 0
    %11 = vsyncpa [#allocation6], 0
    %12 = vsyncpa [#allocation4], 0
    %s13 = scalar_lea.sflag [#allocation4], 1
    %14 = vsyncpa %s13, 0
    loop: start=0, step=1, limit=4
    $region2: #{tpu_custom_call.1} parent=1 // loop_pre_header
      _
    $region3: #{tpu_custom_call.1} parent=1 // loop_header
      %s16 = sphi 0, %s20
      %p17 = scmp.ge.s32.totalorder %s16, 4
      %s26 = sphi 0, %s28
      %s29 = sphi 0, %s26
      %s30 = sphi 0, %s29
      %s46 = sphi 0, %s30
      %s52 = sphi 0, %s54
      %s55 = sphi 0, %s52
      %s56 = sphi 0, %s55
      %s72 = sphi 0, %s56
      %s76 = sphi 0, %s76
      %s78 = sphi 0, %s76
      %s79 = sphi 0, %s78
      %s93 = sphi 0, %s79
      %s99 = sphi 0, %s101
      %s102 = sphi 0, %s99
      %s103 = sphi 0, %s102
      %s119 = sphi 0, %s103
    $region4: #{tpu_custom_call.1} parent=1 // loop_header_branch
      %19 = sbr.rel (%p17) target = $region8
    $region5: #{tpu_custom_call.1} parent=1 // loop_body
      %s21 = ssub.s32 %s16, 1
      %s22 = ssub.s32 %s16, 2
      %s23 = sadd.s32 %s16, 1
      %s24 = ssub.s32 %s16, %s23
      %p25 = scmp.eq.s32.totalorder %s24, 0
      %s27 = sadd.s32 %s26, 1
      %s28 = scalar_select %p25, %s26, %s27
      %p31 = pneg %p25
      %p32 = scmp.eq.s32.totalorder %s16, 1
      %p33 = por %p31, %p32
      %p34 = scmp.ne.s32.totalorder %s26, %s29
      %p35 = scmp.eq.s32.totalorder %s16, 0
      %p36 = por %p34, %p35
      %p37 = scmp.ne.s32.totalorder %s26, %s29
      %p38 = scmp.eq.s32.totalorder %s21, 1
      %p39 = por %p37, %p38
      %p40 = scmp.ne.s32.totalorder %s29, %s30
      %p41 = scmp.eq.s32.totalorder %s21, 0
      %p42 = por %p40, %p41
      %p43 = scmp.ne.s32.totalorder %s29, %s30
      %p44 = scmp.eq.s32.totalorder %s22, 1
      %p45 = por %p43, %p44
      %p47 = scmp.ne.s32.totalorder %s30, %s46
      %p48 = scmp.eq.s32.totalorder %s22, 0
      %p49 = por %p47, %p48
      %s50 = ssub.s32 %s16, %s23
      %p51 = scmp.eq.s32.totalorder %s50, 0
      %s53 = sadd.s32 %s52, 1
      %s54 = scalar_select %p51, %s52, %s53
      %p57 = pneg %p51
      %p58 = scmp.eq.s32.totalorder %s16, 1
      %p59 = por %p57, %p58
      %p60 = scmp.ne.s32.totalorder %s52, %s55
      %p61 = scmp.eq.s32.totalorder %s16, 0
      %p62 = por %p60, %p61
      %p63 = scmp.ne.s32.totalorder %s52, %s55
      %p64 = scmp.eq.s32.totalorder %s21, 1
      %p65 = por %p63, %p64
      %p66 = scmp.ne.s32.totalorder %s55, %s56
      %p67 = scmp.eq.s32.totalorder %s21, 0
      %p68 = por %p66, %p67
      %p69 = scmp.ne.s32.totalorder %s55, %s56
      %p70 = scmp.eq.s32.totalorder %s22, 1
      %p71 = por %p69, %p70
      %p73 = scmp.ne.s32.totalorder %s56, %s72
      %p74 = scmp.eq.s32.totalorder %s22, 0
      %p75 = por %p73, %p74
      %s77 = sadd.s32 %s76, 1
      %p80 = scmp.eq.s32.totalorder %s16, 1
      %p81 = scmp.ne.s32.totalorder %s76, %s78
      %p82 = scmp.eq.s32.totalorder %s16, 0
      %p83 = por %p81, %p82
      %p84 = scmp.ne.s32.totalorder %s76, %s78
      %p85 = scmp.eq.s32.totalorder %s21, 1
      %p86 = por %p84, %p85
      %p87 = scmp.ne.s32.totalorder %s78, %s79
      %p88 = scmp.eq.s32.totalorder %s21, 0
      %p89 = por %p87, %p88
      %p90 = scmp.ne.s32.totalorder %s78, %s79
      %p91 = scmp.eq.s32.totalorder %s22, 1
      %p92 = por %p90, %p91
      %p94 = scmp.ne.s32.totalorder %s79, %s93
      %p95 = scmp.eq.s32.totalorder %s22, 0
      %p96 = por %p94, %p95
      %s97 = ssub.s32 %s16, %s23
      %p98 = scmp.eq.s32.totalorder %s97, 0
      %s100 = sadd.s32 %s99, 1
      %s101 = scalar_select %p98, %s99, %s100
      %p104 = pneg %p98
      %p105 = scmp.eq.s32.totalorder %s16, 1
      %p106 = por %p104, %p105
      %p107 = scmp.ne.s32.totalorder %s99, %s102
      %p108 = scmp.eq.s32.totalorder %s16, 0
      %p109 = por %p107, %p108
      %p110 = scmp.ne.s32.totalorder %s99, %s102
      %p111 = scmp.eq.s32.totalorder %s21, 1
      %p112 = por %p110, %p111
      %p113 = scmp.ne.s32.totalorder %s102, %s103
      %p114 = scmp.eq.s32.totalorder %s21, 0
      %p115 = por %p113, %p114
      %p116 = scmp.ne.s32.totalorder %s102, %s103
      %p117 = scmp.eq.s32.totalorder %s22, 1
      %p118 = por %p116, %p117
      %p120 = scmp.ne.s32.totalorder %s103, %s119
      %p121 = scmp.eq.s32.totalorder %s22, 0
      %p122 = por %p120, %p121
      %p123 = scmp.le.s32.totalorder 1, %s16
      %p124 = scmp.lt.s32.totalorder %s16, 3
      %p125 = pnand %p123, %p124
      %p126 = pneg %p125
      // Predicated region
      $region9: #{tpu_custom_call.1} parent=5 // pred_check
        _
      $region10: #{tpu_custom_call.1} parent=5 // pred_check_branch
        %128 = sbr.rel (%p125) target = $region12
      $region11: #{tpu_custom_call.1} parent=5 // pred_region
        %s129 = ssub.s32 %s16, 1
        // Predicated region
        $region13: #{tpu_custom_call.1} parent=11 // pred_check
          %p130 = pneg %p89
        $region14: #{tpu_custom_call.1} parent=11 // pred_check_branch
          %132 = sbr.rel (%p130) target = $region16
        $region15: #{tpu_custom_call.1} parent=11 // pred_region
          %s134 = ssub.s32 128, 128
          %135 = vsyncadd [#allocation6], %s134
          %s137 = sshll.u32 [#allocation5], 4
          %s138 = int_to_ptr.vmem [resolvable:$true] %s137
          %140 = dma.hbm_to_vmem [thread:$0]  %s2, 128, %s138, [#allocation6]
        $region16: #{tpu_custom_call.1} parent=11 // pred_fallthru
          _
      $region12: #{tpu_custom_call.1} parent=5 // pred_fallthru
        _
      %p141 = scmp.lt.s32.totalorder %s16, 2
      // Predicated region
      $region17: #{tpu_custom_call.1} parent=5 // pred_check
        %p142 = pneg %p141
      $region18: #{tpu_custom_call.1} parent=5 // pred_check_branch
        %144 = sbr.rel (%p142) target = $region20
      $region19: #{tpu_custom_call.1} parent=5 // pred_region
        // Predicated region
        $region21: #{tpu_custom_call.1} parent=19 // pred_check
          %p145 = pneg %p36
        $region22: #{tpu_custom_call.1} parent=19 // pred_check_branch
          %147 = sbr.rel (%p145) target = $region24
        $region23: #{tpu_custom_call.1} parent=19 // pred_region
          %s148 = sand.u32 %s26, 1
          %s149 = scalar_lea.sflag [#allocation3], %s148
          %s150 = sand.u32 %s26, 1
          %s151 = scalar_lea.vmem [#allocation2], %s150
          %s153 = ssub.s32 16, 16
          %154 = vsyncadd %s149, %s153
          %s155 = smul.addr %s16, 16
          %s156 = scalar_lea.hbm %s0, %s155
          %s158 = sshll.u32 %s151, 4
          %s159 = int_to_ptr.vmem [resolvable:$true] %s158
          %161 = dma.hbm_to_vmem [thread:$0]  %s156, 16, %s159, %s149
        $region24: #{tpu_custom_call.1} parent=19 // pred_fallthru
          _
        // Predicated region
        $region25: #{tpu_custom_call.1} parent=19 // pred_check
          %p162 = pneg %p62
        $region26: #{tpu_custom_call.1} parent=19 // pred_check_branch
          %164 = sbr.rel (%p162) target = $region28
        $region27: #{tpu_custom_call.1} parent=19 // pred_region
          %p165 = scmp.lt.s32.totalorder %s16, 1
          %s166 = scalar_select %p165, %s16, 1
          %s167 = scalar_lea.vmem %s1, %s166
        $region28: #{tpu_custom_call.1} parent=19 // pred_fallthru
          _
      $region20: #{tpu_custom_call.1} parent=5 // pred_fallthru
        _
      %p168 = scmp.le.s32.totalorder 1, %s16
      %p169 = scmp.lt.s32.totalorder %s16, 3
      %p170 = pnand %p168, %p169
      %p171 = pneg %p170
      // Predicated region
      $region29: #{tpu_custom_call.1} parent=5 // pred_check
        _
      $region30: #{tpu_custom_call.1} parent=5 // pred_check_branch
        %173 = sbr.rel (%p170) target = $region32
      $region31: #{tpu_custom_call.1} parent=5 // pred_region
        %s174 = ssub.s32 %s16, 1
        %s175 = sand.u32 %s29, 1
        %s176 = scalar_lea.sflag [#allocation3], %s175
        %s177 = sand.u32 %s29, 1
        %s178 = scalar_lea.vmem [#allocation2], %s177
        // Predicated region
        $region33: #{tpu_custom_call.1} parent=31 // pred_check
          %p179 = pneg %p42
        $region34: #{tpu_custom_call.1} parent=31 // pred_check_branch
          %181 = sbr.rel (%p179) target = $region36
        $region35: #{tpu_custom_call.1} parent=31 // pred_region
          %182 = dma.done %s176, 16
        $region36: #{tpu_custom_call.1} parent=31 // pred_fallthru
          _
        // Predicated region
        $region37: #{tpu_custom_call.1} parent=31 // pred_check
          %p183 = pneg %p89
        $region38: #{tpu_custom_call.1} parent=31 // pred_check_branch
          %185 = sbr.rel (%p183) target = $region40
        $region39: #{tpu_custom_call.1} parent=31 // pred_region
          %186 = dma.done [#allocation6], 128
        $region40: #{tpu_custom_call.1} parent=31 // pred_fallthru
          _
        %s187 = sand.u32 %s29, 1
        %s188 = scalar_lea.sflag [#allocation3], %s187
        %s189 = sand.u32 %s29, 1
        %s190 = scalar_lea.vmem [#allocation2], %s189
        %p191 = pneg %p42
        %p192 = pneg %p39
        %p193 = scmp.lt.s32.totalorder %s21, 1
        %s194 = scalar_select %p193, %s21, 1
        %s195 = scalar_lea.vmem %s1, %s194
        %p196 = pneg %p68
        %p197 = pneg %p65
        %p198 = pneg %p89
        %p199 = pneg %p86
        %p200 = pneg %p115
        %p201 = pneg %p112
        %s202 = sand.u32 %s102, 1
        %s203 = scalar_lea.sflag [#allocation4], %s202
        %s204 = sand.u32 %s102, 1
        %s205 = scalar_lea.vmem [#allocation7], %s204
        %p206 = scmp.lt.s32.totalorder %s21, 1
        %s207 = scalar_select %p206, %s21, 1
        %s208 = scalar_lea.vmem %s1, %s207
        %v209 = vld [vmem:[%s178] sm:$0x1]
        %v210 = vld [vmem:[%s208] sm:$0x1]
        %v211 = vld [vmem:[#allocation5] sm:$0xff]
        %v212 = vlaneseq
        %v213 = vshrl.u32 %v212, 7
        %v214 = vadd.s32 %v213, 8
        %v215 = vadd.s32 %v213, 16
        %v216 = vadd.s32 %v213, 24
        %v217 = vadd.s32 %v213, 32
        %v218 = vadd.s32 %v213, 40
        %v219 = vadd.s32 %v213, 48
        %v220 = vadd.s32 %v213, 56
        %v221 = vadd.s32 %v213, 64
        %v222 = vadd.s32 %v213, 72
        %v223 = vlaneseq
        %v224 = vshrl.u32 %v223, 7
        %v225 = vsub.s32 0, %v224
        %v226 = vrot.slane %v209, %v225
        %vm227 = vcmp.eq.s32.totalorder %v213, %v226
        %vm228 = vcmp.eq.s32.totalorder %v214, %v226
        %vm229 = vcmp.eq.s32.totalorder %v215, %v226
        %vm230 = vcmp.eq.s32.totalorder %v216, %v226
        %vm231 = vcmp.eq.s32.totalorder %v217, %v226
        %vm232 = vcmp.eq.s32.totalorder %v218, %v226
        %vm233 = vcmp.eq.s32.totalorder %v219, %v226
        %vm234 = vcmp.eq.s32.totalorder %v220, %v226
        %vm235 = vcmp.eq.s32.totalorder %v221, %v226
        %vm236 = vcmp.eq.s32.totalorder %v222, %v226
        %v237 = vlaneseq
        %v238 = vshrl.u32 %v237, 7
        %v239 = vsub.s32 0, %v238
        %v240 = vrot.slane %v210, %v239
        %vm241 = vcmp.eq.s32.totalorder %v213, %v240
        %vm242 = vcmp.eq.s32.totalorder %v214, %v240
        %vm243 = vcmp.eq.s32.totalorder %v215, %v240
        %vm244 = vcmp.eq.s32.totalorder %v216, %v240
        %vm245 = vcmp.eq.s32.totalorder %v217, %v240
        %vm246 = vcmp.eq.s32.totalorder %v218, %v240
        %vm247 = vcmp.eq.s32.totalorder %v219, %v240
        %vm248 = vcmp.eq.s32.totalorder %v220, %v240
        %vm249 = vcmp.eq.s32.totalorder %v221, %v240
        %vm250 = vcmp.eq.s32.totalorder %v222, %v240
        %vm251 = vmor %vm227, %vm241
        %vm252 = vmor %vm228, %vm242
        %vm253 = vmor %vm229, %vm243
        %vm254 = vmor %vm230, %vm244
        %vm255 = vmor %vm231, %vm245
        %vm256 = vmor %vm232, %vm246
        %vm257 = vmor %vm233, %vm247
        %vm258 = vmor %vm234, %vm248
        %vm259 = vmor %vm235, %vm249
        %vm260 = vmor %vm236, %vm250
        %v261 = vsel %vm251, 1, 0
        %v262 = vsel %vm252, 1, 0
        %v263 = vsel %vm253, 1, 0
        %v264 = vsel %vm254, 1, 0
        %v265 = vsel %vm255, 1, 0
        %v266 = vsel %vm256, 1, 0
        %v267 = vsel %vm257, 1, 0
        %v268 = vsel %vm258, 1, 0
        %v269 = vsel %vm259, 1, 0
        %v270 = vsel %vm260, 1, 0
        %v271 = vcvt.s32.f32 %v261
        %v272 = vcvt.s32.f32 %v262
        %v273 = vcvt.s32.f32 %v263
        %v274 = vcvt.s32.f32 %v264
        %v275 = vcvt.s32.f32 %v265
        %v276 = vcvt.s32.f32 %v266
        %v277 = vcvt.s32.f32 %v267
        %v278 = vcvt.s32.f32 %v268
        %v279 = vcvt.s32.f32 %v269
        %v280 = vcvt.s32.f32 %v270
        %vm281 = vcmask 654336
        %v283 = vsel %vm281, %v211, 0
        %285 = vmatprep.subr.mxu0 0.0
        %286 = vmatpush1.msra.mxu0 %v271
        %287 = vmatprep.subr.mxu0 0.0
        %288 = vmatpush1.msra.mxu0 %v272
        %289 = vmatprep.subr.mxu0 0.0
        %290 = vmatpush1.msra.mxu0 %v273
        %291 = vmatprep.subr.mxu0 0.0
        %292 = vmatpush1.msra.mxu0 %v274
        %293 = vmatprep.subr.mxu0 0.0
        %294 = vmatpush1.msra.mxu0 %v275
        %295 = vmatprep.subr.mxu0 0.0
        %296 = vmatpush1.msra.mxu0 %v276
        %297 = vmatprep.subr.mxu0 0.0
        %298 = vmatpush1.msra.mxu0 %v277
        %299 = vmatprep.subr.mxu0 0.0
        %300 = vmatpush1.msra.mxu0 %v278
        %301 = vmatprep.subr.mxu0 0.0
        %302 = vmatpush1.msra.mxu0 %v279
        %303 = vmatprep.subr.mxu0 0.0
        %304 = vmatpush1.msra.mxu0 %v280
        %305 = vmatprep.subr.mxu0 0.0
        %306 = vmatpush1.msra.mxu0 0.0
        %307 = vmatprep.subr.mxu0 0.0
        %308 = vmatpush1.msra.mxu0 0.0
        %309 = vmatprep.subr.mxu0 0.0
        %310 = vmatpush1.msra.mxu0 0.0
        %311 = vmatprep.subr.mxu0 0.0
        %312 = vmatpush1.msra.mxu0 0.0
        %313 = vmatprep.subr.mxu0 0.0
        %314 = vmatpush1.msra.mxu0 0.0
        %315 = vmatprep.subr.mxu0 0.0
        %316 = vmatpush1.msra.mxu0 0.0
        %317 = vmatprep.subr.mxu0 0.0
        %318 = vmatpush1.msra.mxu0 0.0
        %319 = vmatprep.subr.mxu0 0.0
        %320 = vmatpush1.msra.mxu0 0.0
        %321 = vmatprep.subr.mxu0 0.0
        %322 = vmatpush1.msra.mxu0 0.0
        %323 = vmatprep.subr.mxu0 0.0
        %324 = vmatpush1.msra.mxu0 0.0
        %325 = vmatprep.subr.mxu0 0.0
        %326 = vmatpush1.msra.mxu0 0.0
        %327 = vmatprep.subr.mxu0 0.0
        %328 = vmatpush1.msra.mxu0 0.0
        %329 = vmatprep.subr.mxu0 0.0
        %330 = vmatpush1.msra.mxu0 0.0
        %331 = vmatprep.subr.mxu0 0.0
        %332 = vmatpush1.msra.mxu0 0.0
        %333 = vmatprep.subr.mxu0 0.0
        %334 = vmatpush1.msra.mxu0 0.0
        %335 = vmatprep.subr.mxu0 0.0
        %336 = vmatpush1.msra.mxu0 0.0
        %337 = vmatprep.subr.mxu0 0.0
        %338 = vmatpush1.msra.mxu0 0.0
        %339 = vmatprep.subr.mxu0 0.0
        %340 = vmatpush1.msra.mxu0 0.0
        %341 = vmatprep.subr.mxu0 0.0
        %342 = vmatpush1.msra.mxu0 0.0
        %343 = vmatprep.subr.mxu0 0.0
        %344 = vmatpush1.msra.mxu0 0.0
        %345 = vmatprep.subr.mxu0 0.0
        %346 = vmatpush1.msra.mxu0 0.0
        %347 = vmatprep.subr.mxu0 0.0
        %348 = vmatpush1.msra.mxu0 0.0
        %349 = vmatprep.mubr.f32.mxu0 0.0
        %350 = vmatmul.mubr.f32.gmra.mrb[0].mxu0 %v283
        %v351 = vpop.f32.mrb[0].mxu0
        %v352 = vadd.f32 0.0, %v351
        %v353 = vpop.f32.mrb[0].mxu0
        %354 = vdwg.mxu0
        %v356 = vrot.slane %v352, 4
        %v358 = vmul.f32 %v352, %v356
        %vm359 = vcmask 1043456
        %v360 = vsel %vm359, %v358, 0.0
        %v361 = vrot.slane %v360, 4
        %v362 = vadd.f32 %v360, %v361
        %v363 = vrot.slane %v362, 2
        %v364 = vadd.f32 %v362, %v363
        %v365 = vrot.slane %v364, 1
        %v366 = vadd.f32 %v364, %v365
        %v367 = vxor.u32 %v366, 2147483648
        %v368 = vmul.f32 %v367, 1.442695
        %v369 = vpow.pop %v368
        %v370 = vadd.f32 %v369, 1.0
        %v371 = vrcp.pop %v370
        %v372 = vmul.f32 1.0, %v371
        %373 = vst [vmem:[%s205] sm:$0x1] %v372
        %s374 = sand.u32 %s102, 1
        %s375 = scalar_lea.sflag [#allocation4], %s374
        %s376 = sand.u32 %s102, 1
        %s377 = scalar_lea.vmem [#allocation7], %s376
        // Predicated region
        $region41: #{tpu_custom_call.1} parent=31 // pred_check
          %p378 = pneg %p112
        $region42: #{tpu_custom_call.1} parent=31 // pred_check_branch
          %380 = sbr.rel (%p378) target = $region44
        $region43: #{tpu_custom_call.1} parent=31 // pred_region
          %s382 = ssub.s32 16, 16
          %383 = vsyncadd %s375, %s382
          %s384 = smul.addr %s21, 16
          %s385 = scalar_lea.hbm %s3, %s384
          %s387 = sshll.u32 %s377, 4
          %s388 = int_to_ptr.vmem [resolvable:$true] %s387
          %390 = dma.vmem_to_hbm [thread:$0]  %s388, 16, %s385, %s375
        $region44: #{tpu_custom_call.1} parent=31 // pred_fallthru
          _
      $region32: #{tpu_custom_call.1} parent=5 // pred_fallthru
        _
      %p391 = scmp.le.s32.totalorder 2, %s16
      // Predicated region
      $region45: #{tpu_custom_call.1} parent=5 // pred_check
        %p392 = pneg %p391
      $region46: #{tpu_custom_call.1} parent=5 // pred_check_branch
        %394 = sbr.rel (%p392) target = $region48
      $region47: #{tpu_custom_call.1} parent=5 // pred_region
        %s395 = ssub.s32 %s16, 2
        // Predicated region
        $region49: #{tpu_custom_call.1} parent=47 // pred_check
          %p396 = pneg %p118
        $region50: #{tpu_custom_call.1} parent=47 // pred_check_branch
          %398 = sbr.rel (%p396) target = $region52
        $region51: #{tpu_custom_call.1} parent=47 // pred_region
          %s399 = sand.u32 %s103, 1
          %s400 = scalar_lea.sflag [#allocation4], %s399
          %s401 = sand.u32 %s103, 1
          %s402 = scalar_lea.vmem [#allocation7], %s401
          %403 = dma.done %s400, 16
        $region52: #{tpu_custom_call.1} parent=47 // pred_fallthru
          _
      $region48: #{tpu_custom_call.1} parent=5 // pred_fallthru
        _
    $region6: #{tpu_custom_call.1} parent=1 // loop_footer
      %s20 = sadd.s32 1, %s16
    $region7: #{tpu_custom_call.1} parent=1 // loop_footer_branch
      %15 = sbr.rel target = $region3
    $region8: #{tpu_custom_call.1} parent=1 // loop_exit
      _
    %404 = vsyncpa [#allocation3], 1
    %s405 = scalar_lea.sflag [#allocation3], 1
    %406 = vsyncpa %s405, 1
    %407 = vsyncpa [#allocation6], 1
    %408 = vsyncpa [#allocation4], 1
    %s409 = scalar_lea.sflag [#allocation4], 1
    %410 = vsyncpa %s409, 1

</llo_original>
